<compile_context>
chip_gen: v7x
topology: tpu7x:2x2x1
jax: 0.10.0
libtpu: 0.0.40
codegen_flags: <defaults>
</compile_context>

<pallas_src>
import functools

import jax
import jax.numpy as jnp
import numpy as np
from jax.experimental import pallas as pl
from jax.experimental.pallas import tpu as pltpu


# ----------------------------------------------------------------------------
# Kernel: fused conv3x3+BN+ReLU -> conv3x3+BN -> +residual -> ReLU
# ----------------------------------------------------------------------------
def _basic_block_kernel(x_ref, b1_ref, sh1_ref, b2_ref, sh2_ref, o_ref,
                        xpad_ref, mid_ref, *, H, NB):
    """One grid step processes NB batch elements stacked along matmul M.

    x_ref:   (NB, H, W*Cin)        f32 input, channels packed on lanes (residual)
    b1_ref:  (3, W*Cin, W*Cout)    bf16 banded conv1 weights (BN1 scale folded)
    sh1_ref: (1, W*Cout)           f32 BN1 shift, tiled across W
    b2_ref:  (3, W*Cout, W*Cout)   bf16 banded conv2 weights (BN2 scale folded)
    sh2_ref: (1, W*Cout)           f32 BN2 shift, tiled across W
    o_ref:   (NB, H, W*Cout)       output
    xpad_ref:(NB*(H+2), W*Cin)  bf16 VMEM scratch (H-padded, batch-stacked input)
    mid_ref: (NB*(H+2), W*Cout) bf16 VMEM scratch (conv1 activation, stays in VMEM)
    """
    S = H + 2                      # per-batch-element stride in the padded stacks
    M = NB * S - 2                 # matmul rows (includes 2*(NB-1) discarded rows)
    WCin = xpad_ref.shape[-1]
    WCout = mid_ref.shape[-1]

    # Stage the H-padded, lane-packed bf16 input; cast f32->bf16 once on write.
    # Boundary (zero-pad) rows are rewritten every step on purpose: with a
    # "parallel" grid each TensorCore has its own scratch, so gating this on
    # pl.program_id(0) == 0 would leave one core's pad rows uninitialised.
    for b in range(NB):
        xpad_ref[b * S:b * S + 1, :] = jnp.zeros((1, WCin), jnp.bfloat16)
        xpad_ref[b * S + H + 1:b * S + H + 2, :] = jnp.zeros((1, WCin), jnp.bfloat16)
        xpad_ref[b * S + 1:b * S + 1 + H, :] = x_ref[b].astype(jnp.bfloat16)
        mid_ref[b * S:b * S + 1, :] = jnp.zeros((1, WCout), jnp.bfloat16)
        mid_ref[b * S + H + 1:b * S + H + 2, :] = jnp.zeros((1, WCout), jnp.bfloat16)

    # ---- conv1 (+ folded BN1 scale): 3 banded bf16 matmuls, f32 accumulation.
    acc = jnp.dot(xpad_ref[0:M, :], b1_ref[0], preferred_element_type=jnp.float32)
    for dy in (1, 2):
        acc += jnp.dot(xpad_ref[dy:dy + M, :], b1_ref[dy],
                       preferred_element_type=jnp.float32)
    out1 = jnp.maximum(acc + sh1_ref[...], 0.0).astype(jnp.bfloat16)  # BN1 shift + ReLU

    # conv1 activation never leaves VMEM: copy valid rows of each batch segment.
    for b in range(NB):
        mid_ref[b * S + 1:b * S + 1 + H, :] = out1[b * S:b * S + H, :]

    # ---- conv2 (+ folded BN2 scale).
    acc2 = jnp.dot(mid_ref[0:M, :], b2_ref[0], preferred_element_type=jnp.float32)
    for dy in (1, 2):
        acc2 += jnp.dot(mid_ref[dy:dy + M, :], b2_ref[dy],
                        preferred_element_type=jnp.float32)

    # ---- BN2 shift + residual (full f32) + ReLU, per batch segment.
    for b in range(NB):
        o = acc2[b * S:b * S + H, :] + sh2_ref[...] + x_ref[b].astype(jnp.float32)
        o_ref[b:b + 1] = jnp.maximum(o, 0.0).astype(o_ref.dtype).reshape(1, H, WCout)


# ----------------------------------------------------------------------------
# One-time (load-time) parameter preparation — hoisted out of the forward path
# ----------------------------------------------------------------------------
def _fold_bn(gamma, beta, mean, var, eps=1e-5):
    scale = gamma / jnp.sqrt(var + eps)
    shift = beta - mean * scale
    return scale, shift


def _banded_weights(w_hwio, scale, W):
    """Fold BN scale into HWIO weights and build banded per-dy matrices.

    Returns (3, W*Cin, W*Cout) bf16 with
      B[dy, j*Cin+ci, w*Cout+co] = w[dy, dx, ci, co]*scale[co],  j = w+dx-1,
    zero where j falls outside [0, W) (implicit W zero-padding).
    """
    Cin, Cout = w_hwio.shape[2], w_hwio.shape[3]
    wf = (w_hwio * scale.reshape(1, 1, 1, Cout)).astype(jnp.float32)
    j = jnp.arange(W)[None, :, None]             # input W index
    w = jnp.arange(W)[None, None, :]             # output W index
    dx = jnp.arange(3)[:, None, None]
    sel = (j == w + dx - 1).astype(jnp.float32)  # (3, W, W) band selector
    b = jnp.einsum("xjw,yxio->yjiwo", sel, wf)   # (3, W, Cin, W, Cout)
    return b.reshape(3, W * Cin, W * Cout).astype(jnp.bfloat16)


def prepare_basic_block_params(params, W, eps=1e-5):
    """Build banded bf16 weights + f32 shifts ONCE (e.g. at checkpoint load)."""
    Cout = params["w1"].shape[-1]
    s1, t1 = _fold_bn(params["bn1_gamma"], params["bn1_beta"],
                      params["bn1_mean"], params["bn1_var"], eps)
    s2, t2 = _fold_bn(params["bn2_gamma"], params["bn2_beta"],
                      params["bn2_mean"], params["bn2_var"], eps)
    return {
        "b1": _banded_weights(params["w1"], s1, W),
        "b2": _banded_weights(params["w2"], s2, W),
        "sh1": jnp.tile(t1, W).reshape(1, W * Cout).astype(jnp.float32),
        "sh2": jnp.tile(t2, W).reshape(1, W * Cout).astype(jnp.float32),
    }


# ----------------------------------------------------------------------------
# Wrappers
# ----------------------------------------------------------------------------
def _has_two_tensorcores():
    """Best-effort: does a 'parallel' grid shard across 2 TensorCores here?"""
    try:
        kind = jax.devices()[0].device_kind.lower()
    except Exception:
        return False
    return any(tag in kind for tag in ("v7", "v4", "v5p"))


def basic_block_forward_packed(x_packed, prepped, *, batch_tiles=None):
    """BasicBlock forward on lane-packed activations (N, H, W*C).

    Use this entry point when chaining BasicBlocks so activations stay in the
    lane-packed layout and the NCHW transposes are only paid at stage
    boundaries.
    """
    N, H, WC = x_packed.shape
    b1, sh1 = prepped["b1"], prepped["sh1"]
    b2, sh2 = prepped["b2"], prepped["sh2"]
    WCin, WCout = b1.shape[1], b1.shape[2]
    assert WC == WCin, "input layout does not match prepared weights"
    assert WCin == WCout, \
        "stride=1 / downsample=None path requires inplanes == planes"

    if batch_tiles is None:
        # 2 grid steps only when the chip actually has 2 TCs; on single-TC
        # v5e/v6e a batch grid is pure per-step pipeline overhead.
        batch_tiles = 2 if (_has_two_tensorcores() and N >= 2 and N % 2 == 0) else 1
    if batch_tiles < 1 or N % batch_tiles != 0:
        batch_tiles = 1
    NB = N // batch_tiles

    return pl.pallas_call(
        functools.partial(_basic_block_kernel, H=H, NB=NB),
        out_shape=jax.ShapeDtypeStruct((N, H, WCout), x_packed.dtype),
        grid=(batch_tiles,),
        in_specs=[
            pl.BlockSpec((NB, H, WCin), lambda g: (g, 0, 0)),
            # TODO(synk): single-buffer these grid-invariant operands with
            # pipeline_mode=pl.Buffered(1) once verified stable, to halve
            # their VMEM footprint at larger channel counts.
            pl.BlockSpec((3, WCin, WCout), lambda g: (0, 0, 0)),
            pl.BlockSpec((1, WCout), lambda g: (0, 0)),
            pl.BlockSpec((3, WCout, WCout), lambda g: (0, 0, 0)),
            pl.BlockSpec((1, WCout), lambda g: (0, 0)),
        ],
        out_specs=pl.BlockSpec((NB, H, WCout), lambda g: (g, 0, 0)),
        scratch_shapes=[
            pltpu.VMEM((NB * (H + 2), WCin), jnp.bfloat16),   # padded conv1 input
            pltpu.VMEM((NB * (H + 2), WCout), jnp.bfloat16),  # padded conv1 output
        ],
        compiler_params=pltpu.CompilerParams(
            dimension_semantics=("parallel",),
            vmem_limit_bytes=32 * 1024 * 1024),
    )(x_packed, b1, sh1, b2, sh2)


def basic_block_forward(x_nchw, prepped, *, batch_tiles=None):
    """Drop-in NCHW BasicBlock.forward (stride=1, downsample=None).

    NOTE: the NCHW<->packed transposes below are a full HBM round trip of the
    activation; when running several BasicBlocks back-to-back, stay in the
    packed layout and call basic_block_forward_packed directly.
    """
    N, C, H, W = x_nchw.shape
    x = jnp.transpose(x_nchw, (0, 2, 3, 1)).reshape(N, H, W * C)
    out = basic_block_forward_packed(x, prepped, batch_tiles=batch_tiles)
    Cout = out.shape[-1] // W
    out = out.reshape(N, H, W, Cout)
    return jnp.transpose(out, (0, 3, 1, 2))


# ----------------------------------------------------------------------------
# Plain-JAX reference (f32 lax conv) for correctness check
# ----------------------------------------------------------------------------
def _reference_forward(x_nchw, params):
    def conv(x, w_hwio):
        return jax.lax.conv_general_dilated(
            x, w_hwio, window_strides=(1, 1), padding="SAME",
            dimension_numbers=("NCHW", "HWIO", "NCHW"))

    def bn(x, g, b, m, v, eps=1e-5):
        g, b, m, v = (a.reshape(1, -1, 1, 1) for a in (g, b, m, v))
        return g * (x - m) / jnp.sqrt(v + eps) + b

    out = conv(x_nchw, params["w1"])
    out = bn(out, params["bn1_gamma"], params["bn1_beta"],
             params["bn1_mean"], params["bn1_var"])
    out = jnp.maximum(out, 0.0)
    out = conv(out, params["w2"])
    out = bn(out, params["bn2_gamma"], params["bn2_beta"],
             params["bn2_mean"], params["bn2_var"])
    out = out + x_nchw
    return jnp.maximum(out, 0.0)


if __name__ == "__main__":
    key = jax.random.PRNGKey(0)
    N, C, H, W = 2, 8, 16, 16          # inplanes == planes; W*C == 128 (lane-dense)
    ks = jax.random.split(key, 12)

    x = jax.random.normal(ks[0], (N, C, H, W), jnp.float32)

    # Conv weights created in PyTorch OIHW shape, converted to HWIO.
    w1_oihw = jax.random.normal(ks[1], (C, C, 3, 3), jnp.float32) * 0.1
    w2_oihw = jax.random.normal(ks[2], (C, C, 3, 3), jnp.float32) * 0.1
    params = {
        "w1": jnp.transpose(w1_oihw, (2, 3, 1, 0)),
        "w2": jnp.transpose(w2_oihw, (2, 3, 1, 0)),
        "bn1_gamma": 1.0 + 0.1 * jax.random.normal(ks[3], (C,), jnp.float32),
        "bn1_beta": 0.1 * jax.random.normal(ks[4], (C,), jnp.float32),
        "bn1_mean": 0.1 * jax.random.normal(ks[5], (C,), jnp.float32),
        "bn1_var": jnp.abs(jax.random.normal(ks[6], (C,), jnp.float32)) + 1.0,
        "bn2_gamma": 1.0 + 0.1 * jax.random.normal(ks[7], (C,), jnp.float32),
        "bn2_beta": 0.1 * jax.random.normal(ks[8], (C,), jnp.float32),
        "bn2_mean": 0.1 * jax.random.normal(ks[9], (C,), jnp.float32),
        "bn2_var": jnp.abs(jax.random.normal(ks[10], (C,), jnp.float32)) + 1.0,
    }

    # One-time weight prep (done at parameter-load time, NOT per forward).
    prepped = prepare_basic_block_params(params, W)
    prepped = jax.tree_util.tree_map(jax.block_until_ready, prepped)

    fwd = jax.jit(basic_block_forward)
    out = jax.block_until_ready(fwd(x, prepped))

    ref = _reference_forward(x, params)
    # Tolerance accounts for bf16 MXU operands (accumulation/epilogue are f32).
    np.testing.assert_allclose(np.asarray(out), np.asarray(ref),
                               rtol=5e-2, atol=5e-2)
    print("KERNEL_OK")
</pallas_src>

<mosaic_0001>
module attributes {stable_mosaic.version = 11 : i64} {
  func.func @_basic_block_kernel(%arg0: i32, %arg1: memref<2x16x128xf32, #tpu.memory_space<vmem>>, %arg2: memref<3x128x128xbf16, #tpu.memory_space<vmem>>, %arg3: memref<1x128xf32, #tpu.memory_space<vmem>>, %arg4: memref<3x128x128xbf16, #tpu.memory_space<vmem>>, %arg5: memref<1x128xf32, #tpu.memory_space<vmem>>, %arg6: memref<2x16x128xf32, #tpu.memory_space<vmem>>, %arg7: memref<36x128xbf16, #tpu.memory_space<vmem>>, %arg8: memref<36x128xbf16, #tpu.memory_space<vmem>>) attributes {dimension_semantics = [#tpu.dimension_semantics<parallel>], iteration_bounds = array<i64: 1>, scalar_prefetch = 0 : i64, scratch_operands = 2 : i64, tpu.core_type = #tpu.core_type<tc>, window_params = [{transform_indices = @transform_0, window_bounds = array<i64: 2, 16, 128>}, {pipeline_mode = #tpu.pipeline_mode<synchronous>, transform_indices = @transform_1, window_bounds = array<i64: 3, 128, 128>}, {pipeline_mode = #tpu.pipeline_mode<synchronous>, transform_indices = @transform_2, window_bounds = array<i64: 1, 128>}, {pipeline_mode = #tpu.pipeline_mode<synchronous>, transform_indices = @transform_3, window_bounds = array<i64: 3, 128, 128>}, {pipeline_mode = #tpu.pipeline_mode<synchronous>, transform_indices = @transform_4, window_bounds = array<i64: 1, 128>}, {transform_indices = @transform_5, window_bounds = array<i64: 2, 16, 128>}]} {
    %cst = arith.constant 0.000000e+00 : bf16
    %0 = vector.broadcast %cst : bf16 to vector<1x128xbf16>
    %c0 = arith.constant 0 : index
    %c0_0 = arith.constant 0 : index
    %1 = vector.load %arg7[%c0, %c0_0] : memref<36x128xbf16, #tpu.memory_space<vmem>>, vector<1x128xbf16>
    tpu.vector_store %arg7[%c0, %c0_0], %0 {strides = array<i32>} : memref<36x128xbf16, #tpu.memory_space<vmem>>, vector<1x128xbf16>,
    %cst_1 = arith.constant 0.000000e+00 : bf16
    %2 = vector.broadcast %cst_1 : bf16 to vector<1x128xbf16>
    %c17 = arith.constant 17 : index
    %c0_2 = arith.constant 0 : index
    %3 = vector.load %arg7[%c17, %c0_2] : memref<36x128xbf16, #tpu.memory_space<vmem>>, vector<1x128xbf16>
    tpu.vector_store %arg7[%c17, %c0_2], %2 {strides = array<i32>} : memref<36x128xbf16, #tpu.memory_space<vmem>>, vector<1x128xbf16>,
    %c0_3 = arith.constant 0 : index
    %c0_4 = arith.constant 0 : index
    %c0_5 = arith.constant 0 : index
    %4 = vector.load %arg1[%c0_3, %c0_4, %c0_5] : memref<2x16x128xf32, #tpu.memory_space<vmem>>, vector<1x16x128xf32>
    %5 = vector.shape_cast %4 : vector<1x16x128xf32> to vector<16x128xf32>
    %6 = arith.truncf %5 : vector<16x128xf32> to vector<16x128xbf16>
    %c1 = arith.constant 1 : index
    %c0_6 = arith.constant 0 : index
    %7 = vector.load %arg7[%c1, %c0_6] : memref<36x128xbf16, #tpu.memory_space<vmem>>, vector<16x128xbf16>
    tpu.vector_store %arg7[%c1, %c0_6], %6 {strides = array<i32>} : memref<36x128xbf16, #tpu.memory_space<vmem>>, vector<16x128xbf16>,
    %cst_7 = arith.constant 0.000000e+00 : bf16
    %8 = vector.broadcast %cst_7 : bf16 to vector<1x128xbf16>
    %c0_8 = arith.constant 0 : index
    %c0_9 = arith.constant 0 : index
    %9 = vector.load %arg8[%c0_8, %c0_9] : memref<36x128xbf16, #tpu.memory_space<vmem>>, vector<1x128xbf16>
    tpu.vector_store %arg8[%c0_8, %c0_9], %8 {strides = array<i32>} : memref<36x128xbf16, #tpu.memory_space<vmem>>, vector<1x128xbf16>,
    %cst_10 = arith.constant 0.000000e+00 : bf16
    %10 = vector.broadcast %cst_10 : bf16 to vector<1x128xbf16>
    %c17_11 = arith.constant 17 : index
    %c0_12 = arith.constant 0 : index
    %11 = vector.load %arg8[%c17_11, %c0_12] : memref<36x128xbf16, #tpu.memory_space<vmem>>, vector<1x128xbf16>
    tpu.vector_store %arg8[%c17_11, %c0_12], %10 {strides = array<i32>} : memref<36x128xbf16, #tpu.memory_space<vmem>>, vector<1x128xbf16>,
    %cst_13 = arith.constant 0.000000e+00 : bf16
    %12 = vector.broadcast %cst_13 : bf16 to vector<1x128xbf16>
    %c18 = arith.constant 18 : index
    %c0_14 = arith.constant 0 : index
    %13 = vector.load %arg7[%c18, %c0_14] : memref<36x128xbf16, #tpu.memory_space<vmem>>, vector<1x128xbf16>
    tpu.vector_store %arg7[%c18, %c0_14], %12 {strides = array<i32>} : memref<36x128xbf16, #tpu.memory_space<vmem>>, vector<1x128xbf16>,
    %cst_15 = arith.constant 0.000000e+00 : bf16
    %14 = vector.broadcast %cst_15 : bf16 to vector<1x128xbf16>
    %c35 = arith.constant 35 : index
    %c0_16 = arith.constant 0 : index
    %15 = vector.load %arg7[%c35, %c0_16] : memref<36x128xbf16, #tpu.memory_space<vmem>>, vector<1x128xbf16>
    tpu.vector_store %arg7[%c35, %c0_16], %14 {strides = array<i32>} : memref<36x128xbf16, #tpu.memory_space<vmem>>, vector<1x128xbf16>,
    %c1_17 = arith.constant 1 : index
    %c0_18 = arith.constant 0 : index
    %c0_19 = arith.constant 0 : index
    %16 = vector.load %arg1[%c1_17, %c0_18, %c0_19] : memref<2x16x128xf32, #tpu.memory_space<vmem>>, vector<1x16x128xf32>
    %17 = vector.shape_cast %16 : vector<1x16x128xf32> to vector<16x128xf32>
    %18 = arith.truncf %17 : vector<16x128xf32> to vector<16x128xbf16>
    %c19 = arith.constant 19 : index
    %c0_20 = arith.constant 0 : index
    %19 = vector.load %arg7[%c19, %c0_20] : memref<36x128xbf16, #tpu.memory_space<vmem>>, vector<16x128xbf16>
    tpu.vector_store %arg7[%c19, %c0_20], %18 {strides = array<i32>} : memref<36x128xbf16, #tpu.memory_space<vmem>>, vector<16x128xbf16>,
    %cst_21 = arith.constant 0.000000e+00 : bf16
    %20 = vector.broadcast %cst_21 : bf16 to vector<1x128xbf16>
    %c18_22 = arith.constant 18 : index
    %c0_23 = arith.constant 0 : index
    %21 = vector.load %arg8[%c18_22, %c0_23] : memref<36x128xbf16, #tpu.memory_space<vmem>>, vector<1x128xbf16>
    tpu.vector_store %arg8[%c18_22, %c0_23], %20 {strides = array<i32>} : memref<36x128xbf16, #tpu.memory_space<vmem>>, vector<1x128xbf16>,
    %cst_24 = arith.constant 0.000000e+00 : bf16
    %22 = vector.broadcast %cst_24 : bf16 to vector<1x128xbf16>
    %c35_25 = arith.constant 35 : index
    %c0_26 = arith.constant 0 : index
    %23 = vector.load %arg8[%c35_25, %c0_26] : memref<36x128xbf16, #tpu.memory_space<vmem>>, vector<1x128xbf16>
    tpu.vector_store %arg8[%c35_25, %c0_26], %22 {strides = array<i32>} : memref<36x128xbf16, #tpu.memory_space<vmem>>, vector<1x128xbf16>,
    %c0_27 = arith.constant 0 : index
    %c0_28 = arith.constant 0 : index
    %24 = vector.load %arg7[%c0_27, %c0_28] : memref<36x128xbf16, #tpu.memory_space<vmem>>, vector<34x128xbf16>
    %c0_29 = arith.constant 0 : index
    %c0_30 = arith.constant 0 : index
    %c0_31 = arith.constant 0 : index
    %25 = vector.load %arg2[%c0_29, %c0_30, %c0_31] : memref<3x128x128xbf16, #tpu.memory_space<vmem>>, vector<1x128x128xbf16>
    %26 = vector.shape_cast %25 : vector<1x128x128xbf16> to vector<128x128xbf16>
    %cst_32 = arith.constant dense<0.000000e+00> : vector<34x128xf32>
    %27 = tpu.matmul %24, %26, %cst_32 {dimension_numbers = #tpu.dot_dimension_numbers<[1], [0], [0], [1], [0, 0, 1, 1], [], []>} : vector<34x128xbf16>, vector<128x128xbf16>, vector<34x128xf32> -> vector<34x128xf32>
    %c1_33 = arith.constant 1 : index
    %c0_34 = arith.constant 0 : index
    %28 = vector.load %arg7[%c1_33, %c0_34] : memref<36x128xbf16, #tpu.memory_space<vmem>>, vector<34x128xbf16>
    %c1_35 = arith.constant 1 : index
    %c0_36 = arith.constant 0 : index
    %c0_37 = arith.constant 0 : index
    %29 = vector.load %arg2[%c1_35, %c0_36, %c0_37] : memref<3x128x128xbf16, #tpu.memory_space<vmem>>, vector<1x128x128xbf16>
    %30 = vector.shape_cast %29 : vector<1x128x128xbf16> to vector<128x128xbf16>
    %cst_38 = arith.constant dense<0.000000e+00> : vector<34x128xf32>
    %31 = tpu.matmul %28, %30, %cst_38 {dimension_numbers = #tpu.dot_dimension_numbers<[1], [0], [0], [1], [0, 0, 1, 1], [], []>} : vector<34x128xbf16>, vector<128x128xbf16>, vector<34x128xf32> -> vector<34x128xf32>
    %32 = arith.addf %27, %31 : vector<34x128xf32>
    %c2 = arith.constant 2 : index
    %c0_39 = arith.constant 0 : index
    %33 = vector.load %arg7[%c2, %c0_39] : memref<36x128xbf16, #tpu.memory_space<vmem>>, vector<34x128xbf16>
    %c2_40 = arith.constant 2 : index
    %c0_41 = arith.constant 0 : index
    %c0_42 = arith.constant 0 : index
    %34 = vector.load %arg2[%c2_40, %c0_41, %c0_42] : memref<3x128x128xbf16, #tpu.memory_space<vmem>>, vector<1x128x128xbf16>
    %35 = vector.shape_cast %34 : vector<1x128x128xbf16> to vector<128x128xbf16>
    %cst_43 = arith.constant dense<0.000000e+00> : vector<34x128xf32>
    %36 = tpu.matmul %33, %35, %cst_43 {dimension_numbers = #tpu.dot_dimension_numbers<[1], [0], [0], [1], [0, 0, 1, 1], [], []>} : vector<34x128xbf16>, vector<128x128xbf16>, vector<34x128xf32> -> vector<34x128xf32>
    %37 = arith.addf %32, %36 : vector<34x128xf32>
    %c0_44 = arith.constant 0 : index
    %c0_45 = arith.constant 0 : index
    %38 = vector.load %arg3[%c0_44, %c0_45] : memref<1x128xf32, #tpu.memory_space<vmem>>, vector<1x128xf32>
    %39 = vector.broadcast %38 : vector<1x128xf32> to vector<34x128xf32>
    %40 = arith.addf %37, %39 : vector<34x128xf32>
    %cst_46 = arith.constant 0.000000e+00 : f32
    %41 = vector.broadcast %cst_46 : f32 to vector<34x128xf32>
    %42 = arith.maximumf %40, %41 : vector<34x128xf32>
    %43 = arith.truncf %42 : vector<34x128xf32> to vector<34x128xbf16>
    %44 = vector.extract_strided_slice %43 {offsets = [0, 0], sizes = [16, 128], strides = [1, 1]} : vector<34x128xbf16> to vector<16x128xbf16>
    %c1_47 = arith.constant 1 : index
    %c0_48 = arith.constant 0 : index
    %45 = vector.load %arg8[%c1_47, %c0_48] : memref<36x128xbf16, #tpu.memory_space<vmem>>, vector<16x128xbf16>
    tpu.vector_store %arg8[%c1_47, %c0_48], %44 {strides = array<i32>} : memref<36x128xbf16, #tpu.memory_space<vmem>>, vector<16x128xbf16>,
    %46 = vector.extract_strided_slice %43 {offsets = [18, 0], sizes = [16, 128], strides = [1, 1]} : vector<34x128xbf16> to vector<16x128xbf16>
    %c19_49 = arith.constant 19 : index
    %c0_50 = arith.constant 0 : index
    %47 = vector.load %arg8[%c19_49, %c0_50] : memref<36x128xbf16, #tpu.memory_space<vmem>>, vector<16x128xbf16>
    tpu.vector_store %arg8[%c19_49, %c0_50], %46 {strides = array<i32>} : memref<36x128xbf16, #tpu.memory_space<vmem>>, vector<16x128xbf16>,
    %c0_51 = arith.constant 0 : index
    %c0_52 = arith.constant 0 : index
    %48 = vector.load %arg8[%c0_51, %c0_52] : memref<36x128xbf16, #tpu.memory_space<vmem>>, vector<34x128xbf16>
    %c0_53 = arith.constant 0 : index
    %c0_54 = arith.constant 0 : index
    %c0_55 = arith.constant 0 : index
    %49 = vector.load %arg4[%c0_53, %c0_54, %c0_55] : memref<3x128x128xbf16, #tpu.memory_space<vmem>>, vector<1x128x128xbf16>
    %50 = vector.shape_cast %49 : vector<1x128x128xbf16> to vector<128x128xbf16>
    %cst_56 = arith.constant dense<0.000000e+00> : vector<34x128xf32>
    %51 = tpu.matmul %48, %50, %cst_56 {dimension_numbers = #tpu.dot_dimension_numbers<[1], [0], [0], [1], [0, 0, 1, 1], [], []>} : vector<34x128xbf16>, vector<128x128xbf16>, vector<34x128xf32> -> vector<34x128xf32>
    %c1_57 = arith.constant 1 : index
    %c0_58 = arith.constant 0 : index
    %52 = vector.load %arg8[%c1_57, %c0_58] : memref<36x128xbf16, #tpu.memory_space<vmem>>, vector<34x128xbf16>
    %c1_59 = arith.constant 1 : index
    %c0_60 = arith.constant 0 : index
    %c0_61 = arith.constant 0 : index
    %53 = vector.load %arg4[%c1_59, %c0_60, %c0_61] : memref<3x128x128xbf16, #tpu.memory_space<vmem>>, vector<1x128x128xbf16>
    %54 = vector.shape_cast %53 : vector<1x128x128xbf16> to vector<128x128xbf16>
    %cst_62 = arith.constant dense<0.000000e+00> : vector<34x128xf32>
    %55 = tpu.matmul %52, %54, %cst_62 {dimension_numbers = #tpu.dot_dimension_numbers<[1], [0], [0], [1], [0, 0, 1, 1], [], []>} : vector<34x128xbf16>, vector<128x128xbf16>, vector<34x128xf32> -> vector<34x128xf32>
    %56 = arith.addf %51, %55 : vector<34x128xf32>
    %c2_63 = arith.constant 2 : index
    %c0_64 = arith.constant 0 : index
    %57 = vector.load %arg8[%c2_63, %c0_64] : memref<36x128xbf16, #tpu.memory_space<vmem>>, vector<34x128xbf16>
    %c2_65 = arith.constant 2 : index
    %c0_66 = arith.constant 0 : index
    %c0_67 = arith.constant 0 : index
    %58 = vector.load %arg4[%c2_65, %c0_66, %c0_67] : memref<3x128x128xbf16, #tpu.memory_space<vmem>>, vector<1x128x128xbf16>
    %59 = vector.shape_cast %58 : vector<1x128x128xbf16> to vector<128x128xbf16>
    %cst_68 = arith.constant dense<0.000000e+00> : vector<34x128xf32>
    %60 = tpu.matmul %57, %59, %cst_68 {dimension_numbers = #tpu.dot_dimension_numbers<[1], [0], [0], [1], [0, 0, 1, 1], [], []>} : vector<34x128xbf16>, vector<128x128xbf16>, vector<34x128xf32> -> vector<34x128xf32>
    %61 = arith.addf %56, %60 : vector<34x128xf32>
    %62 = vector.extract_strided_slice %61 {offsets = [0, 0], sizes = [16, 128], strides = [1, 1]} : vector<34x128xf32> to vector<16x128xf32>
    %c0_69 = arith.constant 0 : index
    %c0_70 = arith.constant 0 : index
    %63 = vector.load %arg5[%c0_69, %c0_70] : memref<1x128xf32, #tpu.memory_space<vmem>>, vector<1x128xf32>
    %64 = vector.broadcast %63 : vector<1x128xf32> to vector<16x128xf32>
    %65 = arith.addf %62, %64 : vector<16x128xf32>
    %c0_71 = arith.constant 0 : index
    %c0_72 = arith.constant 0 : index
    %c0_73 = arith.constant 0 : index
    %66 = vector.load %arg1[%c0_71, %c0_72, %c0_73] : memref<2x16x128xf32, #tpu.memory_space<vmem>>, vector<1x16x128xf32>
    %67 = vector.shape_cast %66 : vector<1x16x128xf32> to vector<16x128xf32>
    %68 = arith.addf %65, %67 : vector<16x128xf32>
    %cst_74 = arith.constant 0.000000e+00 : f32
    %69 = vector.broadcast %cst_74 : f32 to vector<16x128xf32>
    %70 = arith.maximumf %68, %69 : vector<16x128xf32>
    %71 = vector.shape_cast %70 : vector<16x128xf32> to vector<1x16x128xf32>
    %c0_75 = arith.constant 0 : index
    %c0_76 = arith.constant 0 : index
    %c0_77 = arith.constant 0 : index
    %72 = vector.load %arg6[%c0_75, %c0_76, %c0_77] : memref<2x16x128xf32, #tpu.memory_space<vmem>>, vector<1x16x128xf32>
    tpu.vector_store %arg6[%c0_75, %c0_76, %c0_77], %71 {strides = array<i32>} : memref<2x16x128xf32, #tpu.memory_space<vmem>>, vector<1x16x128xf32>,
    %73 = vector.extract_strided_slice %61 {offsets = [18, 0], sizes = [16, 128], strides = [1, 1]} : vector<34x128xf32> to vector<16x128xf32>
    %c0_78 = arith.constant 0 : index
    %c0_79 = arith.constant 0 : index
    %74 = vector.load %arg5[%c0_78, %c0_79] : memref<1x128xf32, #tpu.memory_space<vmem>>, vector<1x128xf32>
    %75 = vector.broadcast %74 : vector<1x128xf32> to vector<16x128xf32>
    %76 = arith.addf %73, %75 : vector<16x128xf32>
    %c1_80 = arith.constant 1 : index
    %c0_81 = arith.constant 0 : index
    %c0_82 = arith.constant 0 : index
    %77 = vector.load %arg1[%c1_80, %c0_81, %c0_82] : memref<2x16x128xf32, #tpu.memory_space<vmem>>, vector<1x16x128xf32>
    %78 = vector.shape_cast %77 : vector<1x16x128xf32> to vector<16x128xf32>
    %79 = arith.addf %76, %78 : vector<16x128xf32>
    %cst_83 = arith.constant 0.000000e+00 : f32
    %80 = vector.broadcast %cst_83 : f32 to vector<16x128xf32>
    %81 = arith.maximumf %79, %80 : vector<16x128xf32>
    %82 = vector.shape_cast %81 : vector<16x128xf32> to vector<1x16x128xf32>
    %c1_84 = arith.constant 1 : index
    %c0_85 = arith.constant 0 : index
    %c0_86 = arith.constant 0 : index
    %83 = vector.load %arg6[%c1_84, %c0_85, %c0_86] : memref<2x16x128xf32, #tpu.memory_space<vmem>>, vector<1x16x128xf32>
    tpu.vector_store %arg6[%c1_84, %c0_85, %c0_86], %82 {strides = array<i32>} : memref<2x16x128xf32, #tpu.memory_space<vmem>>, vector<1x16x128xf32>,
    return
  }
  func.func @transform_0(%arg0: i32) -> (i32, i32, i32) {
    %c0_i32 = arith.constant 0 : i32
    %c0_i32_0 = arith.constant 0 : i32
    %c0_i32_1 = arith.constant 0 : i32
    return %arg0, %c0_i32, %c0_i32_0 : i32, i32, i32
  }
  func.func @transform_1(%arg0: i32) -> (i32, i32, i32) {
    %c0_i32 = arith.constant 0 : i32
    %c0_i32_0 = arith.constant 0 : i32
    %c0_i32_1 = arith.constant 0 : i32
    %c0_i32_2 = arith.constant 0 : i32
    return %c0_i32, %c0_i32_0, %c0_i32_1 : i32, i32, i32
  }
  func.func @transform_2(%arg0: i32) -> (i32, i32) {
    %c0_i32 = arith.constant 0 : i32
    %c0_i32_0 = arith.constant 0 : i32
    %c0_i32_1 = arith.constant 0 : i32
    return %c0_i32, %c0_i32_0 : i32, i32
  }
  func.func @transform_3(%arg0: i32) -> (i32, i32, i32) {
    %c0_i32 = arith.constant 0 : i32
    %c0_i32_0 = arith.constant 0 : i32
    %c0_i32_1 = arith.constant 0 : i32
    %c0_i32_2 = arith.constant 0 : i32
    return %c0_i32, %c0_i32_0, %c0_i32_1 : i32, i32, i32
  }
  func.func @transform_4(%arg0: i32) -> (i32, i32) {
    %c0_i32 = arith.constant 0 : i32
    %c0_i32_0 = arith.constant 0 : i32
    %c0_i32_1 = arith.constant 0 : i32
    return %c0_i32, %c0_i32_0 : i32, i32
  }
  func.func @transform_5(%arg0: i32) -> (i32, i32, i32) {
    %c0_i32 = arith.constant 0 : i32
    %c0_i32_0 = arith.constant 0 : i32
    %c0_i32_1 = arith.constant 0 : i32
    return %arg0, %c0_i32, %c0_i32_0 : i32, i32, i32
  }
}

</mosaic_0001>

<llo_original>
// kernel: basic_block_forward.1
$region0: #{basic_block_forward.1}
  #allocation0 [shape = 'u32[]', space=smem, size = 0x4, offset = 0x4, fixed_abs, tag = 'smem constant byte address 0x4 - core index']
  #allocation1 [shape = 'u32[144,128]{1,0:T(1,128)}', space=vmem, size = 0x12000, scoped, tag = 'internal scratch']
  #allocation2 [shape = 'bf16[36,128]{1,0:T(8,128)(2,1)}', space=vmem, size = 0x2800, scoped, tag = 'scratch operand']
  #allocation3 [shape = 'bf16[36,128]{1,0:T(8,128)(2,1)}', space=vmem, size = 0x2800, scoped, tag = 'scratch operand']
  %s0 = inlined_call_operand.vmem [shape: f32[2,16,128], index: 0, kind: input, shape index: {}]
  %s1 = inlined_call_operand.vmem [shape: bf16[3,128,128], index: 1, kind: input, shape index: {}]
  %s2 = inlined_call_operand.vmem [shape: f32[1,128], index: 2, kind: input, shape index: {}]
  %s3 = inlined_call_operand.vmem [shape: bf16[3,128,128], index: 3, kind: input, shape index: {}]
  %s4 = inlined_call_operand.vmem [shape: f32[1,128], index: 4, kind: input, shape index: {}]
  %s5 = inlined_call_operand.vmem [shape: f32[2,16,128], index: 5, kind: output, shape index: {}]
  %s6 = sld [smem:[#allocation0]]
  $region30: #{basic_block_forward.1} parent=0
    _
  %s8 = ssub.s32 1, %s6
  %s9 = scalar_select 0, %s8, %s6
  // Predicated region
  $region2: #{basic_block_forward.1} parent=0 // pred_check
    _
  $region3: #{basic_block_forward.1} parent=0 // pred_check_branch
    %11 = sbr.rel (0) target = $region5
  $region4: #{basic_block_forward.1} parent=0 // pred_region
    _
  $region5: #{basic_block_forward.1} parent=0 // pred_fallthru
    _
  // Predicated region
  $region6: #{basic_block_forward.1} parent=0 // pred_check
    _
  $region7: #{basic_block_forward.1} parent=0 // pred_check_branch
    %13 = sbr.rel (0) target = $region9
  $region8: #{basic_block_forward.1} parent=0 // pred_region
    _
  $region9: #{basic_block_forward.1} parent=0 // pred_fallthru
    _
  // Predicated region
  $region10: #{basic_block_forward.1} parent=0 // pred_check
    _
  $region11: #{basic_block_forward.1} parent=0 // pred_check_branch
    %15 = sbr.rel (0) target = $region13
  $region12: #{basic_block_forward.1} parent=0 // pred_region
    _
  $region13: #{basic_block_forward.1} parent=0 // pred_fallthru
    _
  // Predicated region
  $region14: #{basic_block_forward.1} parent=0 // pred_check
    _
  $region15: #{basic_block_forward.1} parent=0 // pred_check_branch
    %17 = sbr.rel (0) target = $region17
  $region16: #{basic_block_forward.1} parent=0 // pred_region
    _
  $region17: #{basic_block_forward.1} parent=0 // pred_fallthru
    _
  // Predicated region
  $region18: #{basic_block_forward.1} parent=0 // pred_check
    _
  $region19: #{basic_block_forward.1} parent=0 // pred_check_branch
    %19 = sbr.rel (0) target = $region21
  $region20: #{basic_block_forward.1} parent=0 // pred_region
    _
  $region21: #{basic_block_forward.1} parent=0 // pred_fallthru
    _
  %vm21 = vcmask 1040384
  %vm22 = vsmask.f32 256
  %vm23 = vmand %vm21, %vm22
  %v24 = vld [vmem:[#allocation2] sm:$0x1]
  %v25 = vsel %vm23, 0, %v24
  %26 = vst [vmem:[#allocation2] sm:$0x1] %v25
  %vm27 = vsmask.f32 7938
  %vm28 = vmand %vm21, %vm27
  %v29 = vld [vmem:[#allocation2 + $0x8] sm:$0x1]
  %v30 = vsel %vm28, 0, %v29
  %31 = vst [vmem:[#allocation2 + $0x8] sm:$0x1] %v30
  %v32 = vld [vmem:[%s0] sm:$0xff]
  %v33 = vld [vmem:[%s0 + $0x8] sm:$0xff]
  %v34 = vpack.c.bf16 %v33, %v32
  %v36 = vunpack.c.l.b16 %v34
  %v37 = vunpack.c.h.b16 %v34
  %v38 = vpack.c.b16 %v36, %v36
  %v39 = vpack.c.b16 %v37, %v37
  %vm40 = vsmask.f32 4368
  %vm41 = vmor %vm22, %vm40
  %v43 = vshrl.u32 %v38, 16
  %v45 = vrot.slane %v43, 7
  %v46 = vshll.u32 %v38, 16
  %v48 = vor.u32 %v45, %v46
  %v49 = vrot.slane %v45, 4
  %v51 = vshrl.u32 %v39, 16
  %v53 = vrot.slane %v51, 7
  %v54 = vshll.u32 %v39, 16
  %v56 = vor.u32 %v53, %v54
  %v57 = vsel %vm41, %v49, %v56
  %v58 = vrot.slane %v53, 4
  %vm62 = vcmask 1043456
  %vm63 = vmand %vm62, %vm27
  %v64 = vld [vmem:[#allocation2] sm:$0xf]
  %v65 = vsel %vm63, %v48, %v64
  %66 = vst [vmem:[#allocation2] sm:$0xf] %v65
  %67 = vst [vmem:[#allocation2 + $0x4] sm:$0xf] %v57
  %v68 = vld [vmem:[#allocation2 + $0x8] sm:$0x1]
  %v69 = vsel %vm23, %v58, %v68
  %70 = vst [vmem:[#allocation2 + $0x8] sm:$0x1] %v69
  %v71 = vld [vmem:[#allocation3] sm:$0x1]
  %v72 = vsel %vm23, 0, %v71
  %73 = vst [vmem:[#allocation3] sm:$0x1] %v72
  %v74 = vld [vmem:[#allocation3 + $0x8] sm:$0x1]
  %v75 = vsel %vm28, 0, %v74
  %76 = vst [vmem:[#allocation3 + $0x8] sm:$0x1] %v75
  %vm77 = vcmask 1041409
  %vm78 = vsmask.f32 1280
  %vm79 = vmand %vm77, %vm78
  %v80 = vld [vmem:[#allocation2 + $0x8] sm:$0x2]
  %v81 = vsel %vm79, 0, %v80
  %82 = vst [vmem:[#allocation2 + $0x8] sm:$0x2] %v81
  %vm83 = vsmask.f32 7942
  %vm84 = vmand %vm77, %vm83
  %v85 = vld [vmem:[#allocation2 + $0x10] sm:$0x2]
  %v86 = vsel %vm84, 0, %v85
  %87 = vst [vmem:[#allocation2 + $0x10] sm:$0x2] %v86
  %s88 = scalar_lea.vmem %s0, 16
  %v89 = vld [vmem:[%s88] sm:$0xff]
  %v90 = vld [vmem:[%s88 + $0x8] sm:$0xff]
  %v91 = vpack.c.bf16 %v90, %v89
  %v93 = vunpack.c.l.b16 %v91
  %v94 = vunpack.c.h.b16 %v91
  %v95 = vpack.c.b16 %v93, %v93
  %v96 = vpack.c.b16 %v94, %v94
  %vm97 = vsmask.f32 5392
  %vm98 = vmor %vm78, %vm97
  %v100 = vshrl.u32 %v95, 16
  %v102 = vrot.slane %v100, 6
  %v103 = vshll.u32 %v95, 16
  %v105 = vrot.slane %v103, 7
  %v106 = vor.u32 %v102, %v105
  %v107 = vrot.slane %v106, 4
  %v109 = vshrl.u32 %v96, 16
  %v111 = vrot.slane %v109, 6
  %v112 = vshll.u32 %v96, 16
  %v114 = vrot.slane %v112, 7
  %v115 = vor.u32 %v111, %v114
  %v116 = vsel %vm98, %v107, %v115
  %v117 = vrot.slane %v115, 4
  %vm121 = vcmask 1043457
  %vm122 = vmand %vm121, %vm83
  %v123 = vld [vmem:[#allocation2 + $0x8] sm:$0xe]
  %v124 = vsel %vm122, %v106, %v123
  %125 = vst [vmem:[#allocation2 + $0x8] sm:$0xe] %v124
  %126 = vst [vmem:[#allocation2 + $0xc] sm:$0xf] %v116
  %vm127 = vcmask 1041408
  %vm128 = vmand %vm127, %vm78
  %v129 = vld [vmem:[#allocation2 + $0x10] sm:$0x3]
  %v130 = vsel %vm128, %v117, %v129
  %131 = vst [vmem:[#allocation2 + $0x10] sm:$0x3] %v130
  %v132 = vld [vmem:[#allocation3 + $0x8] sm:$0x2]
  %v133 = vsel %vm79, 0, %v132
  %134 = vst [vmem:[#allocation3 + $0x8] sm:$0x2] %v133
  %v135 = vld [vmem:[#allocation3 + $0x10] sm:$0x2]
  %v136 = vsel %vm84, 0, %v135
  %137 = vst [vmem:[#allocation3 + $0x10] sm:$0x2] %v136
  %v138 = vld [vmem:[#allocation2] sm:$0xf]
  %v139 = vld [vmem:[#allocation2 + $0x4] sm:$0xf]
  %v140 = vld [vmem:[#allocation2 + $0x8] sm:$0xf]
  %v141 = vld [vmem:[#allocation2 + $0xc] sm:$0xf]
  %v142 = vld [vmem:[#allocation2 + $0x10] sm:$0x1]
  %v143 = vld [vmem:[%s1] sm:$0xf]
  %v144 = vld [vmem:[%s1 + $0x4] sm:$0xf]
  %v145 = vld [vmem:[%s1 + $0x8] sm:$0xf]
  %v146 = vld [vmem:[%s1 + $0xc] sm:$0xf]
  %v147 = vld [vmem:[%s1 + $0x10] sm:$0xf]
  %v148 = vld [vmem:[%s1 + $0x14] sm:$0xf]
  %v149 = vld [vmem:[%s1 + $0x18] sm:$0xf]
  %v150 = vld [vmem:[%s1 + $0x1c] sm:$0xf]
  %v151 = vld [vmem:[%s1 + $0x20] sm:$0xf]
  %v152 = vld [vmem:[%s1 + $0x24] sm:$0xf]
  %v153 = vld [vmem:[%s1 + $0x28] sm:$0xf]
  %v154 = vld [vmem:[%s1 + $0x2c] sm:$0xf]
  %v155 = vld [vmem:[%s1 + $0x30] sm:$0xf]
  %v156 = vld [vmem:[%s1 + $0x34] sm:$0xf]
  %v157 = vld [vmem:[%s1 + $0x38] sm:$0xf]
  %v158 = vld [vmem:[%s1 + $0x3c] sm:$0xf]
  %v159 = vld [vmem:[#allocation2 + $0x10] sm:$0x3]
  %s160 = scalar_lea.vmem %s1, 64
  %v161 = vld [vmem:[%s160] sm:$0xf]
  %v162 = vld [vmem:[%s160 + $0x4] sm:$0xf]
  %v163 = vld [vmem:[%s160 + $0x8] sm:$0xf]
  %v164 = vld [vmem:[%s160 + $0xc] sm:$0xf]
  %v165 = vld [vmem:[%s160 + $0x10] sm:$0xf]
  %v166 = vld [vmem:[%s160 + $0x14] sm:$0xf]
  %v167 = vld [vmem:[%s160 + $0x18] sm:$0xf]
  %v168 = vld [vmem:[%s160 + $0x1c] sm:$0xf]
  %v169 = vld [vmem:[%s160 + $0x20] sm:$0xf]
  %v170 = vld [vmem:[%s160 + $0x24] sm:$0xf]
  %v171 = vld [vmem:[%s160 + $0x28] sm:$0xf]
  %v172 = vld [vmem:[%s160 + $0x2c] sm:$0xf]
  %v173 = vld [vmem:[%s160 + $0x30] sm:$0xf]
  %v174 = vld [vmem:[%s160 + $0x34] sm:$0xf]
  %v175 = vld [vmem:[%s160 + $0x38] sm:$0xf]
  %v176 = vld [vmem:[%s160 + $0x3c] sm:$0xf]
  %v182 = vunpack.c.l.b16 %v138
  %v183 = vunpack.c.l.b16 %v139
  %v184 = vunpack.c.l.b16 %v140
  %v185 = vunpack.c.l.b16 %v141
  %v186 = vunpack.c.l.b16 %v159
  %v187 = vpack.c.b16 %v183, %v182
  %v188 = vpack.c.b16 %v185, %v184
  %v189 = vpack.c.b16 %v186, %v186
  %vm190 = vsmask.f32 7424
  %v192 = vshrl.u32 %v187, 16
  %v194 = vshll.u32 %v187, 16
  %v196 = vrot.slane %v194, 1
  %v197 = vor.u32 %v192, %v196
  %v199 = vshll.u32 %v188, 16
  %v201 = vrot.slane %v199, 1
  %v202 = vsel %vm190, %v197, %v201
  %v203 = vshrl.u32 %v188, 16
  %v205 = vor.u32 %v203, %v201
  %v207 = vshll.u32 %v189, 16
  %v209 = vrot.slane %v207, 1
  %v210 = vsel %vm190, %v205, %v209
  %v211 = vshrl.u32 %v189, 16
  %v213 = vor.u32 %v211, %v209
  %v233 = vunpack.c.l.b16 %v161
  %v234 = vunpack.c.l.b16 %v162
  %v235 = vunpack.c.l.b16 %v163
  %v236 = vunpack.c.l.b16 %v164
  %v237 = vunpack.c.l.b16 %v165
  %v238 = vunpack.c.l.b16 %v166
  %v239 = vunpack.c.l.b16 %v167
  %v240 = vunpack.c.l.b16 %v168
  %v241 = vunpack.c.l.b16 %v169
  %v242 = vunpack.c.l.b16 %v170
  %v243 = vunpack.c.l.b16 %v171
  %v244 = vunpack.c.l.b16 %v172
  %v245 = vunpack.c.l.b16 %v173
  %v246 = vunpack.c.l.b16 %v174
  %v247 = vunpack.c.l.b16 %v175
  %v248 = vunpack.c.l.b16 %v176
  %v249 = vpack.c.b16 %v234, %v233
  %v250 = vpack.c.b16 %v236, %v235
  %v251 = vpack.c.b16 %v238, %v237
  %v252 = vpack.c.b16 %v240, %v239
  %v253 = vpack.c.b16 %v242, %v241
  %v254 = vpack.c.b16 %v244, %v243
  %v255 = vpack.c.b16 %v246, %v245
  %v256 = vpack.c.b16 %v248, %v247
  %265 = vmatprep.subr.bf16.mxu0 0
  %266 = vmatpush1.bf16.msra.mxu0 %v249
  %267 = vmatprep.subr.bf16.mxu0 0
  %268 = vmatpush1.bf16.msra.mxu0 %v250
  %269 = vmatprep.subr.bf16.mxu0 0
  %270 = vmatpush1.bf16.msra.mxu0 %v251
  %271 = vmatprep.subr.bf16.mxu0 0
  %272 = vmatpush1.bf16.msra.mxu0 %v252
  %273 = vmatprep.subr.bf16.mxu0 0
  %274 = vmatpush1.bf16.msra.mxu0 %v253
  %275 = vmatprep.subr.bf16.mxu0 0
  %276 = vmatpush1.bf16.msra.mxu0 %v254
  %277 = vmatprep.subr.bf16.mxu0 0
  %278 = vmatpush1.bf16.msra.mxu0 %v255
  %279 = vmatprep.subr.bf16.mxu0 0
  %280 = vmatpush1.bf16.msra.mxu0 %v256
  %281 = vmatprep.subr.bf16.mxu0 0
  %282 = vmatpush1.bf16.msra.mxu0 0
  %283 = vmatprep.subr.bf16.mxu0 0
  %284 = vmatpush1.bf16.msra.mxu0 0
  %285 = vmatprep.subr.bf16.mxu0 0
  %286 = vmatpush1.bf16.msra.mxu0 0
  %287 = vmatprep.subr.bf16.mxu0 0
  %288 = vmatpush1.bf16.msra.mxu0 0
  %289 = vmatprep.subr.bf16.mxu0 0
  %290 = vmatpush1.bf16.msra.mxu0 0
  %291 = vmatprep.subr.bf16.mxu0 0
  %292 = vmatpush1.bf16.msra.mxu0 0
  %293 = vmatprep.subr.bf16.mxu0 0
  %294 = vmatpush1.bf16.msra.mxu0 0
  %295 = vmatprep.subr.bf16.mxu0 0
  %296 = vmatpush1.bf16.msra.mxu0 0
  %297 = vmatprep.mubr.bf16.mxu0 0
  %298 = vmatmul.mubr.bf16.gmra.mrb[0].mxu0 %v202
  %v299 = vpop.f32.mrb[0].mxu0
  %v300 = vadd.f32 0.0, %v299
  %v301 = vpop.f32.mrb[0].mxu0
  %v302 = vpop.f32.mrb[0].mxu0
  %v303 = vadd.f32 0.0, %v302
  %v304 = vpop.f32.mrb[0].mxu0
  %305 = vmatprep.mubr.bf16.mxu0 0
  %306 = vmatmul.mubr.bf16.gmra.mrb[0].mxu0 %v210
  %v307 = vpop.f32.mrb[0].mxu0
  %v308 = vadd.f32 0.0, %v307
  %v309 = vpop.f32.mrb[0].mxu0
  %v310 = vpop.f32.mrb[0].mxu0
  %v311 = vadd.f32 0.0, %v310
  %v312 = vpop.f32.mrb[0].mxu0
  %313 = vmatprep.mubr.bf16.mxu0 0
  %314 = vmatmul.mubr.bf16.gmra.mrb[0].mxu0 %v213
  %v315 = vpop.f32.mrb[0].mxu0
  %v316 = vadd.f32 0.0, %v315
  %v317 = vpop.f32.mrb[0].mxu0
  %v318 = vpop.f32.mrb[0].mxu0
  %v319 = vpop.f32.mrb[0].mxu0
  %320 = vdwg.mxu0
  %v322 = vunpack.c.l.b16 %v142
  %v323 = vpack.c.b16 %v322, %v322
  %v343 = vunpack.c.l.b16 %v143
  %v344 = vunpack.c.l.b16 %v144
  %v345 = vunpack.c.l.b16 %v145
  %v346 = vunpack.c.l.b16 %v146
  %v347 = vunpack.c.l.b16 %v147
  %v348 = vunpack.c.l.b16 %v148
  %v349 = vunpack.c.l.b16 %v149
  %v350 = vunpack.c.l.b16 %v150
  %v351 = vunpack.c.l.b16 %v151
  %v352 = vunpack.c.l.b16 %v152
  %v353 = vunpack.c.l.b16 %v153
  %v354 = vunpack.c.l.b16 %v154
  %v355 = vunpack.c.l.b16 %v155
  %v356 = vunpack.c.l.b16 %v156
  %v357 = vunpack.c.l.b16 %v157
  %v358 = vunpack.c.l.b16 %v158
  %v359 = vpack.c.b16 %v344, %v343
  %v360 = vpack.c.b16 %v346, %v345
  %v361 = vpack.c.b16 %v348, %v347
  %v362 = vpack.c.b16 %v350, %v349
  %v363 = vpack.c.b16 %v352, %v351
  %v364 = vpack.c.b16 %v354, %v353
  %v365 = vpack.c.b16 %v356, %v355
  %v366 = vpack.c.b16 %v358, %v357
  %375 = vmatprep.subr.bf16.mxu0 0
  %376 = vmatpush1.bf16.msra.mxu0 %v359
  %377 = vmatprep.subr.bf16.mxu0 0
  %378 = vmatpush1.bf16.msra.mxu0 %v360
  %379 = vmatprep.subr.bf16.mxu0 0
  %380 = vmatpush1.bf16.msra.mxu0 %v361
  %381 = vmatprep.subr.bf16.mxu0 0
  %382 = vmatpush1.bf16.msra.mxu0 %v362
  %383 = vmatprep.subr.bf16.mxu0 0
  %384 = vmatpush1.bf16.msra.mxu0 %v363
  %385 = vmatprep.subr.bf16.mxu0 0
  %386 = vmatpush1.bf16.msra.mxu0 %v364
  %387 = vmatprep.subr.bf16.mxu0 0
  %388 = vmatpush1.bf16.msra.mxu0 %v365
  %389 = vmatprep.subr.bf16.mxu0 0
  %390 = vmatpush1.bf16.msra.mxu0 %v366
  %391 = vmatprep.subr.bf16.mxu0 0
  %392 = vmatpush1.bf16.msra.mxu0 0
  %393 = vmatprep.subr.bf16.mxu0 0
  %394 = vmatpush1.bf16.msra.mxu0 0
  %395 = vmatprep.subr.bf16.mxu0 0
  %396 = vmatpush1.bf16.msra.mxu0 0
  %397 = vmatprep.subr.bf16.mxu0 0
  %398 = vmatpush1.bf16.msra.mxu0 0
  %399 = vmatprep.subr.bf16.mxu0 0
  %400 = vmatpush1.bf16.msra.mxu0 0
  %401 = vmatprep.subr.bf16.mxu0 0
  %402 = vmatpush1.bf16.msra.mxu0 0
  %403 = vmatprep.subr.bf16.mxu0 0
  %404 = vmatpush1.bf16.msra.mxu0 0
  %405 = vmatprep.subr.bf16.mxu0 0
  %406 = vmatpush1.bf16.msra.mxu0 0
  %407 = vmatprep.mubr.bf16.mxu0 0
  %408 = vmatmul.mubr.bf16.gmra.mrb[0].mxu0 %v187
  %v409 = vpop.f32.mrb[0].mxu0
  %v410 = vadd.f32 %v300, %v409
  %v411 = vpop.f32.mrb[0].mxu0
  %v412 = vpop.f32.mrb[0].mxu0
  %v413 = vadd.f32 %v303, %v412
  %v414 = vpop.f32.mrb[0].mxu0
  %415 = vmatprep.mubr.bf16.mxu0 0
  %416 = vmatmul.mubr.bf16.gmra.mrb[0].mxu0 %v188
  %v417 = vpop.f32.mrb[0].mxu0
  %v418 = vadd.f32 %v308, %v417
  %v419 = vpop.f32.mrb[0].mxu0
  %v420 = vpop.f32.mrb[0].mxu0
  %v421 = vadd.f32 %v311, %v420
  %v422 = vpop.f32.mrb[0].mxu0
  %423 = vmatprep.mubr.bf16.mxu0 0
  %424 = vmatmul.mubr.bf16.gmra.mrb[0].mxu0 %v323
  %v425 = vpop.f32.mrb[0].mxu0
  %v426 = vadd.f32 %v316, %v425
  %v427 = vpop.f32.mrb[0].mxu0
  %v428 = vpop.f32.mrb[0].mxu0
  %v429 = vpop.f32.mrb[0].mxu0
  %430 = vdwg.mxu0
  %v431 = vld [vmem:[#allocation2] sm:$0xe]
  %s432 = scalar_lea.vmem %s1, 128
  %v433 = vld [vmem:[%s432] sm:$0xf]
  %v434 = vld [vmem:[%s432 + $0x4] sm:$0xf]
  %v435 = vld [vmem:[%s432 + $0x8] sm:$0xf]
  %v436 = vld [vmem:[%s432 + $0xc] sm:$0xf]
  %v437 = vld [vmem:[%s432 + $0x10] sm:$0xf]
  %v438 = vld [vmem:[%s432 + $0x14] sm:$0xf]
  %v439 = vld [vmem:[%s432 + $0x18] sm:$0xf]
  %v440 = vld [vmem:[%s432 + $0x1c] sm:$0xf]
  %v441 = vld [vmem:[%s432 + $0x20] sm:$0xf]
  %v442 = vld [vmem:[%s432 + $0x24] sm:$0xf]
  %v443 = vld [vmem:[%s432 + $0x28] sm:$0xf]
  %v444 = vld [vmem:[%s432 + $0x2c] sm:$0xf]
  %v445 = vld [vmem:[%s432 + $0x30] sm:$0xf]
  %v446 = vld [vmem:[%s432 + $0x34] sm:$0xf]
  %v447 = vld [vmem:[%s432 + $0x38] sm:$0xf]
  %v448 = vld [vmem:[%s432 + $0x3c] sm:$0xf]
  %v450 = vunpack.c.l.b16 %v431
  %v451 = vpack.c.b16 %v183, %v450
  %vm452 = vcmask 1046528
  %v453 = vrot.slane %v451, 1
  %v454 = vrot.slane %v188, 1
  %v455 = vsel %vm452, %v453, %v454
  %v456 = vrot.slane %v189, 1
  %v457 = vsel %vm452, %v454, %v456
  %v477 = vunpack.c.l.b16 %v433
  %v478 = vunpack.c.l.b16 %v434
  %v479 = vunpack.c.l.b16 %v435
  %v480 = vunpack.c.l.b16 %v436
  %v481 = vunpack.c.l.b16 %v437
  %v482 = vunpack.c.l.b16 %v438
  %v483 = vunpack.c.l.b16 %v439
  %v484 = vunpack.c.l.b16 %v440
  %v485 = vunpack.c.l.b16 %v441
  %v486 = vunpack.c.l.b16 %v442
  %v487 = vunpack.c.l.b16 %v443
  %v488 = vunpack.c.l.b16 %v444
  %v489 = vunpack.c.l.b16 %v445
  %v490 = vunpack.c.l.b16 %v446
  %v491 = vunpack.c.l.b16 %v447
  %v492 = vunpack.c.l.b16 %v448
  %v493 = vpack.c.b16 %v478, %v477
  %v494 = vpack.c.b16 %v480, %v479
  %v495 = vpack.c.b16 %v482, %v481
  %v496 = vpack.c.b16 %v484, %v483
  %v497 = vpack.c.b16 %v486, %v485
  %v498 = vpack.c.b16 %v488, %v487
  %v499 = vpack.c.b16 %v490, %v489
  %v500 = vpack.c.b16 %v492, %v491
  %509 = vmatprep.subr.bf16.mxu0 0
  %510 = vmatpush1.bf16.msra.mxu0 %v493
  %511 = vmatprep.subr.bf16.mxu0 0
  %512 = vmatpush1.bf16.msra.mxu0 %v494
  %513 = vmatprep.subr.bf16.mxu0 0
  %514 = vmatpush1.bf16.msra.mxu0 %v495
  %515 = vmatprep.subr.bf16.mxu0 0
  %516 = vmatpush1.bf16.msra.mxu0 %v496
  %517 = vmatprep.subr.bf16.mxu0 0
  %518 = vmatpush1.bf16.msra.mxu0 %v497
  %519 = vmatprep.subr.bf16.mxu0 0
  %520 = vmatpush1.bf16.msra.mxu0 %v498
  %521 = vmatprep.subr.bf16.mxu0 0
  %522 = vmatpush1.bf16.msra.mxu0 %v499
  %523 = vmatprep.subr.bf16.mxu0 0
  %524 = vmatpush1.bf16.msra.mxu0 %v500
  %525 = vmatprep.subr.bf16.mxu0 0
  %526 = vmatpush1.bf16.msra.mxu0 0
  %527 = vmatprep.subr.bf16.mxu0 0
  %528 = vmatpush1.bf16.msra.mxu0 0
  %529 = vmatprep.subr.bf16.mxu0 0
  %530 = vmatpush1.bf16.msra.mxu0 0
  %531 = vmatprep.subr.bf16.mxu0 0
  %532 = vmatpush1.bf16.msra.mxu0 0
  %533 = vmatprep.subr.bf16.mxu0 0
  %534 = vmatpush1.bf16.msra.mxu0 0
  %535 = vmatprep.subr.bf16.mxu0 0
  %536 = vmatpush1.bf16.msra.mxu0 0
  %537 = vmatprep.subr.bf16.mxu0 0
  %538 = vmatpush1.bf16.msra.mxu0 0
  %539 = vmatprep.subr.bf16.mxu0 0
  %540 = vmatpush1.bf16.msra.mxu0 0
  %541 = vmatprep.mubr.bf16.mxu0 0
  %542 = vmatmul.mubr.bf16.gmra.mrb[0].mxu0 %v455
  %v543 = vpop.f32.mrb[0].mxu0
  %v544 = vadd.f32 0.0, %v543
  %v545 = vpop.f32.mrb[0].mxu0
  %v546 = vpop.f32.mrb[0].mxu0
  %v547 = vadd.f32 0.0, %v546
  %v548 = vpop.f32.mrb[0].mxu0
  %549 = vmatprep.mubr.bf16.mxu0 0
  %550 = vmatmul.mubr.bf16.gmra.mrb[0].mxu0 %v457
  %v551 = vpop.f32.mrb[0].mxu0
  %v552 = vadd.f32 0.0, %v551
  %v553 = vpop.f32.mrb[0].mxu0
  %v554 = vpop.f32.mrb[0].mxu0
  %v555 = vadd.f32 0.0, %v554
  %v556 = vpop.f32.mrb[0].mxu0
  %557 = vmatprep.mubr.bf16.mxu0 0
  %558 = vmatmul.mubr.bf16.gmra.mrb[0].mxu0 %v456
  %v559 = vpop.f32.mrb[0].mxu0
  %v560 = vadd.f32 0.0, %v559
  %v561 = vpop.f32.mrb[0].mxu0
  %v562 = vpop.f32.mrb[0].mxu0
  %v563 = vpop.f32.mrb[0].mxu0
  %564 = vdwg.mxu0
  %v565 = vadd.f32 %v410, %v544
  %v566 = vadd.f32 %v413, %v547
  %v567 = vadd.f32 %v418, %v552
  %v568 = vadd.f32 %v421, %v555
  %v569 = vadd.f32 %v426, %v560
  %v570 = vld [vmem:[%s2] sm:$0x1]
  %v572 = vlaneseq
  %v573 = vshrl.u32 %v572, 7
  %v574 = vsub.s32 0, %v573
  %v575 = vrot.slane %v570, %v574
  %v577 = vadd.f32 %v565, %v575
  %v578 = vadd.f32 %v566, %v575
  %v579 = vadd.f32 %v567, %v575
  %v580 = vadd.f32 %v568, %v575
  %v581 = vadd.f32 %v569, %v575
  %v582 = vmax.f32 %v577, 0.0
  %v583 = vmax.f32 %v578, 0.0
  %v584 = vmax.f32 %v579, 0.0
  %v585 = vmax.f32 %v580, 0.0
  %v586 = vmax.f32 %v581, 0.0
  %v587 = vpack.c.bf16 %v583, %v582
  %v588 = vpack.c.bf16 %v585, %v584
  %v589 = vpack.c.bf16 %v586, %v586
  %v591 = vunpack.c.l.b16 %v587
  %v592 = vunpack.c.h.b16 %v587
  %v593 = vpack.c.b16 %v591, %v591
  %v594 = vpack.c.b16 %v592, %v592
  %v596 = vshrl.u32 %v593, 16
  %v598 = vrot.slane %v596, 7
  %v599 = vshll.u32 %v593, 16
  %v601 = vor.u32 %v598, %v599
  %v602 = vrot.slane %v598, 4
  %v604 = vshrl.u32 %v594, 16
  %v606 = vrot.slane %v604, 7
  %v607 = vshll.u32 %v594, 16
  %v609 = vor.u32 %v606, %v607
  %v610 = vsel %vm41, %v602, %v609
  %v611 = vrot.slane %v606, 4
  %v615 = vld [vmem:[#allocation3] sm:$0xf]
  %v616 = vsel %vm63, %v601, %v615
  %617 = vst [vmem:[#allocation3] sm:$0xf] %v616
  %618 = vst [vmem:[#allocation3 + $0x4] sm:$0xf] %v610
  %v619 = vld [vmem:[#allocation3 + $0x8] sm:$0x1]
  %v620 = vsel %vm23, %v611, %v619
  %621 = vst [vmem:[#allocation3 + $0x8] sm:$0x1] %v620
  %v624 = vunpack.c.l.b16 %v588
  %v625 = vunpack.c.h.b16 %v588
  %v626 = vunpack.c.l.b16 %v589
  %v627 = vpack.c.b16 %v624, %v624
  %v628 = vpack.c.b16 %v625, %v625
  %v629 = vpack.c.b16 %v626, %v626
  %v631 = vshrl.u32 %v627, 16
  %v633 = vrot.slane %v631, 7
  %v634 = vshll.u32 %v627, 16
  %v636 = vor.u32 %v633, %v634
  %v637 = vrot.slane %v633, 4
  %v639 = vshrl.u32 %v628, 16
  %v641 = vrot.slane %v639, 7
  %v642 = vshll.u32 %v628, 16
  %v644 = vor.u32 %v641, %v642
  %v645 = vsel %vm41, %v637, %v644
  %v646 = vrot.slane %v641, 4
  %v648 = vshrl.u32 %v629, 16
  %v650 = vrot.slane %v648, 7
  %v651 = vshll.u32 %v629, 16
  %v653 = vor.u32 %v650, %v651
  %v654 = vsel %vm41, %v646, %v653
  %v658 = vld [vmem:[#allocation3 + $0x8] sm:$0xe]
  %v659 = vsel %vm122, %v636, %v658
  %660 = vst [vmem:[#allocation3 + $0x8] sm:$0xe] %v659
  %661 = vst [vmem:[#allocation3 + $0xc] sm:$0xf] %v645
  %v662 = vld [vmem:[#allocation3 + $0x10] sm:$0x3]
  %v663 = vsel %vm128, %v654, %v662
  %664 = vst [vmem:[#allocation3 + $0x10] sm:$0x3] %v663
  %v665 = vld [vmem:[#allocation3] sm:$0xf]
  %v666 = vld [vmem:[#allocation3 + $0x4] sm:$0xf]
  %v667 = vld [vmem:[#allocation3 + $0x8] sm:$0xf]
  %v668 = vld [vmem:[#allocation3 + $0xc] sm:$0xf]
  %v669 = vld [vmem:[#allocation3 + $0x10] sm:$0x1]
  %v670 = vld [vmem:[%s3] sm:$0xf]
  %v671 = vld [vmem:[%s3 + $0x4] sm:$0xf]
  %v672 = vld [vmem:[%s3 + $0x8] sm:$0xf]
  %v673 = vld [vmem:[%s3 + $0xc] sm:$0xf]
  %v674 = vld [vmem:[%s3 + $0x10] sm:$0xf]
  %v675 = vld [vmem:[%s3 + $0x14] sm:$0xf]
  %v676 = vld [vmem:[%s3 + $0x18] sm:$0xf]
  %v677 = vld [vmem:[%s3 + $0x1c] sm:$0xf]
  %v678 = vld [vmem:[%s3 + $0x20] sm:$0xf]
  %v679 = vld [vmem:[%s3 + $0x24] sm:$0xf]
  %v680 = vld [vmem:[%s3 + $0x28] sm:$0xf]
  %v681 = vld [vmem:[%s3 + $0x2c] sm:$0xf]
  %v682 = vld [vmem:[%s3 + $0x30] sm:$0xf]
  %v683 = vld [vmem:[%s3 + $0x34] sm:$0xf]
  %v684 = vld [vmem:[%s3 + $0x38] sm:$0xf]
  %v685 = vld [vmem:[%s3 + $0x3c] sm:$0xf]
  %v686 = vld [vmem:[#allocation3 + $0x10] sm:$0x3]
  %s687 = scalar_lea.vmem %s3, 64
  %v688 = vld [vmem:[%s687] sm:$0xf]
  %v689 = vld [vmem:[%s687 + $0x4] sm:$0xf]
  %v690 = vld [vmem:[%s687 + $0x8] sm:$0xf]
  %v691 = vld [vmem:[%s687 + $0xc] sm:$0xf]
  %v692 = vld [vmem:[%s687 + $0x10] sm:$0xf]
  %v693 = vld [vmem:[%s687 + $0x14] sm:$0xf]
  %v694 = vld [vmem:[%s687 + $0x18] sm:$0xf]
  %v695 = vld [vmem:[%s687 + $0x1c] sm:$0xf]
  %v696 = vld [vmem:[%s687 + $0x20] sm:$0xf]
  %v697 = vld [vmem:[%s687 + $0x24] sm:$0xf]
  %v698 = vld [vmem:[%s687 + $0x28] sm:$0xf]
  %v699 = vld [vmem:[%s687 + $0x2c] sm:$0xf]
  %v700 = vld [vmem:[%s687 + $0x30] sm:$0xf]
  %v701 = vld [vmem:[%s687 + $0x34] sm:$0xf]
  %v702 = vld [vmem:[%s687 + $0x38] sm:$0xf]
  %v703 = vld [vmem:[%s687 + $0x3c] sm:$0xf]
  %v709 = vunpack.c.l.b16 %v665
  %v710 = vunpack.c.l.b16 %v666
  %v711 = vunpack.c.l.b16 %v667
  %v712 = vunpack.c.l.b16 %v668
  %v713 = vunpack.c.l.b16 %v686
  %v714 = vpack.c.b16 %v710, %v709
  %v715 = vpack.c.b16 %v712, %v711
  %v716 = vpack.c.b16 %v713, %v713
  %v718 = vshrl.u32 %v714, 16
  %v720 = vshll.u32 %v714, 16
  %v722 = vrot.slane %v720, 1
  %v723 = vor.u32 %v718, %v722
  %v725 = vshll.u32 %v715, 16
  %v727 = vrot.slane %v725, 1
  %v728 = vsel %vm190, %v723, %v727
  %v729 = vshrl.u32 %v715, 16
  %v731 = vor.u32 %v729, %v727
  %v733 = vshll.u32 %v716, 16
  %v735 = vrot.slane %v733, 1
  %v736 = vsel %vm190, %v731, %v735
  %v737 = vshrl.u32 %v716, 16
  %v739 = vor.u32 %v737, %v735
  %v759 = vunpack.c.l.b16 %v688
  %v760 = vunpack.c.l.b16 %v689
  %v761 = vunpack.c.l.b16 %v690
  %v762 = vunpack.c.l.b16 %v691
  %v763 = vunpack.c.l.b16 %v692
  %v764 = vunpack.c.l.b16 %v693
  %v765 = vunpack.c.l.b16 %v694
  %v766 = vunpack.c.l.b16 %v695
  %v767 = vunpack.c.l.b16 %v696
  %v768 = vunpack.c.l.b16 %v697
  %v769 = vunpack.c.l.b16 %v698
  %v770 = vunpack.c.l.b16 %v699
  %v771 = vunpack.c.l.b16 %v700
  %v772 = vunpack.c.l.b16 %v701
  %v773 = vunpack.c.l.b16 %v702
  %v774 = vunpack.c.l.b16 %v703
  %v775 = vpack.c.b16 %v760, %v759
  %v776 = vpack.c.b16 %v762, %v761
  %v777 = vpack.c.b16 %v764, %v763
  %v778 = vpack.c.b16 %v766, %v765
  %v779 = vpack.c.b16 %v768, %v767
  %v780 = vpack.c.b16 %v770, %v769
  %v781 = vpack.c.b16 %v772, %v771
  %v782 = vpack.c.b16 %v774, %v773
  %791 = vmatprep.subr.bf16.mxu0 0
  %792 = vmatpush1.bf16.msra.mxu0 %v775
  %793 = vmatprep.subr.bf16.mxu0 0
  %794 = vmatpush1.bf16.msra.mxu0 %v776
  %795 = vmatprep.subr.bf16.mxu0 0
  %796 = vmatpush1.bf16.msra.mxu0 %v777
  %797 = vmatprep.subr.bf16.mxu0 0
  %798 = vmatpush1.bf16.msra.mxu0 %v778
  %799 = vmatprep.subr.bf16.mxu0 0
  %800 = vmatpush1.bf16.msra.mxu0 %v779
  %801 = vmatprep.subr.bf16.mxu0 0
  %802 = vmatpush1.bf16.msra.mxu0 %v780
  %803 = vmatprep.subr.bf16.mxu0 0
  %804 = vmatpush1.bf16.msra.mxu0 %v781
  %805 = vmatprep.subr.bf16.mxu0 0
  %806 = vmatpush1.bf16.msra.mxu0 %v782
  %807 = vmatprep.subr.bf16.mxu0 0
  %808 = vmatpush1.bf16.msra.mxu0 0
  %809 = vmatprep.subr.bf16.mxu0 0
  %810 = vmatpush1.bf16.msra.mxu0 0
  %811 = vmatprep.subr.bf16.mxu0 0
  %812 = vmatpush1.bf16.msra.mxu0 0
  %813 = vmatprep.subr.bf16.mxu0 0
  %814 = vmatpush1.bf16.msra.mxu0 0
  %815 = vmatprep.subr.bf16.mxu0 0
  %816 = vmatpush1.bf16.msra.mxu0 0
  %817 = vmatprep.subr.bf16.mxu0 0
  %818 = vmatpush1.bf16.msra.mxu0 0
  %819 = vmatprep.subr.bf16.mxu0 0
  %820 = vmatpush1.bf16.msra.mxu0 0
  %821 = vmatprep.subr.bf16.mxu0 0
  %822 = vmatpush1.bf16.msra.mxu0 0
  %823 = vmatprep.mubr.bf16.mxu0 0
  %824 = vmatmul.mubr.bf16.gmra.mrb[0].mxu0 %v728
  %v825 = vpop.f32.mrb[0].mxu0
  %v826 = vadd.f32 0.0, %v825
  %v827 = vpop.f32.mrb[0].mxu0
  %v828 = vpop.f32.mrb[0].mxu0
  %v829 = vadd.f32 0.0, %v828
  %v830 = vpop.f32.mrb[0].mxu0
  %831 = vmatprep.mubr.bf16.mxu0 0
  %832 = vmatmul.mubr.bf16.gmra.mrb[0].mxu0 %v736
  %v833 = vpop.f32.mrb[0].mxu0
  %v834 = vadd.f32 0.0, %v833
  %v835 = vpop.f32.mrb[0].mxu0
  %v836 = vpop.f32.mrb[0].mxu0
  %v837 = vadd.f32 0.0, %v836
  %v838 = vpop.f32.mrb[0].mxu0
  %839 = vmatprep.mubr.bf16.mxu0 0
  %840 = vmatmul.mubr.bf16.gmra.mrb[0].mxu0 %v739
  %v841 = vpop.f32.mrb[0].mxu0
  %v842 = vadd.f32 0.0, %v841
  %v843 = vpop.f32.mrb[0].mxu0
  %v844 = vpop.f32.mrb[0].mxu0
  %v845 = vpop.f32.mrb[0].mxu0
  %846 = vdwg.mxu0
  %v848 = vunpack.c.l.b16 %v669
  %v849 = vpack.c.b16 %v848, %v848
  %v869 = vunpack.c.l.b16 %v670
  %v870 = vunpack.c.l.b16 %v671
  %v871 = vunpack.c.l.b16 %v672
  %v872 = vunpack.c.l.b16 %v673
  %v873 = vunpack.c.l.b16 %v674
  %v874 = vunpack.c.l.b16 %v675
  %v875 = vunpack.c.l.b16 %v676
  %v876 = vunpack.c.l.b16 %v677
  %v877 = vunpack.c.l.b16 %v678
  %v878 = vunpack.c.l.b16 %v679
  %v879 = vunpack.c.l.b16 %v680
  %v880 = vunpack.c.l.b16 %v681
  %v881 = vunpack.c.l.b16 %v682
  %v882 = vunpack.c.l.b16 %v683
  %v883 = vunpack.c.l.b16 %v684
  %v884 = vunpack.c.l.b16 %v685
  %v885 = vpack.c.b16 %v870, %v869
  %v886 = vpack.c.b16 %v872, %v871
  %v887 = vpack.c.b16 %v874, %v873
  %v888 = vpack.c.b16 %v876, %v875
  %v889 = vpack.c.b16 %v878, %v877
  %v890 = vpack.c.b16 %v880, %v879
  %v891 = vpack.c.b16 %v882, %v881
  %v892 = vpack.c.b16 %v884, %v883
  %901 = vmatprep.subr.bf16.mxu0 0
  %902 = vmatpush1.bf16.msra.mxu0 %v885
  %903 = vmatprep.subr.bf16.mxu0 0
  %904 = vmatpush1.bf16.msra.mxu0 %v886
  %905 = vmatprep.subr.bf16.mxu0 0
  %906 = vmatpush1.bf16.msra.mxu0 %v887
  %907 = vmatprep.subr.bf16.mxu0 0
  %908 = vmatpush1.bf16.msra.mxu0 %v888
  %909 = vmatprep.subr.bf16.mxu0 0
  %910 = vmatpush1.bf16.msra.mxu0 %v889
  %911 = vmatprep.subr.bf16.mxu0 0
  %912 = vmatpush1.bf16.msra.mxu0 %v890
  %913 = vmatprep.subr.bf16.mxu0 0
  %914 = vmatpush1.bf16.msra.mxu0 %v891
  %915 = vmatprep.subr.bf16.mxu0 0
  %916 = vmatpush1.bf16.msra.mxu0 %v892
  %917 = vmatprep.subr.bf16.mxu0 0
  %918 = vmatpush1.bf16.msra.mxu0 0
  %919 = vmatprep.subr.bf16.mxu0 0
  %920 = vmatpush1.bf16.msra.mxu0 0
  %921 = vmatprep.subr.bf16.mxu0 0
  %922 = vmatpush1.bf16.msra.mxu0 0
  %923 = vmatprep.subr.bf16.mxu0 0
  %924 = vmatpush1.bf16.msra.mxu0 0
  %925 = vmatprep.subr.bf16.mxu0 0
  %926 = vmatpush1.bf16.msra.mxu0 0
  %927 = vmatprep.subr.bf16.mxu0 0
  %928 = vmatpush1.bf16.msra.mxu0 0
  %929 = vmatprep.subr.bf16.mxu0 0
  %930 = vmatpush1.bf16.msra.mxu0 0
  %931 = vmatprep.subr.bf16.mxu0 0
  %932 = vmatpush1.bf16.msra.mxu0 0
  %933 = vmatprep.mubr.bf16.mxu0 0
  %934 = vmatmul.mubr.bf16.gmra.mrb[0].mxu0 %v714
  %v935 = vpop.f32.mrb[0].mxu0
  %v936 = vadd.f32 %v826, %v935
  %v937 = vpop.f32.mrb[0].mxu0
  %v938 = vpop.f32.mrb[0].mxu0
  %v939 = vadd.f32 %v829, %v938
  %v940 = vpop.f32.mrb[0].mxu0
  %941 = vmatprep.mubr.bf16.mxu0 0
  %942 = vmatmul.mubr.bf16.gmra.mrb[0].mxu0 %v715
  %v943 = vpop.f32.mrb[0].mxu0
  %v944 = vadd.f32 %v834, %v943
  %v945 = vpop.f32.mrb[0].mxu0
  %v946 = vpop.f32.mrb[0].mxu0
  %v947 = vadd.f32 %v837, %v946
  %v948 = vpop.f32.mrb[0].mxu0
  %949 = vmatprep.mubr.bf16.mxu0 0
  %950 = vmatmul.mubr.bf16.gmra.mrb[0].mxu0 %v849
  %v951 = vpop.f32.mrb[0].mxu0
  %v952 = vadd.f32 %v842, %v951
  %v953 = vpop.f32.mrb[0].mxu0
  %v954 = vpop.f32.mrb[0].mxu0
  %v955 = vpop.f32.mrb[0].mxu0
  %956 = vdwg.mxu0
  %v957 = vld [vmem:[#allocation3] sm:$0xe]
  %s958 = scalar_lea.vmem %s3, 128
  %v959 = vld [vmem:[%s958] sm:$0xf]
  %v960 = vld [vmem:[%s958 + $0x4] sm:$0xf]
  %v961 = vld [vmem:[%s958 + $0x8] sm:$0xf]
  %v962 = vld [vmem:[%s958 + $0xc] sm:$0xf]
  %v963 = vld [vmem:[%s958 + $0x10] sm:$0xf]
  %v964 = vld [vmem:[%s958 + $0x14] sm:$0xf]
  %v965 = vld [vmem:[%s958 + $0x18] sm:$0xf]
  %v966 = vld [vmem:[%s958 + $0x1c] sm:$0xf]
  %v967 = vld [vmem:[%s958 + $0x20] sm:$0xf]
  %v968 = vld [vmem:[%s958 + $0x24] sm:$0xf]
  %v969 = vld [vmem:[%s958 + $0x28] sm:$0xf]
  %v970 = vld [vmem:[%s958 + $0x2c] sm:$0xf]
  %v971 = vld [vmem:[%s958 + $0x30] sm:$0xf]
  %v972 = vld [vmem:[%s958 + $0x34] sm:$0xf]
  %v973 = vld [vmem:[%s958 + $0x38] sm:$0xf]
  %v974 = vld [vmem:[%s958 + $0x3c] sm:$0xf]
  %v976 = vunpack.c.l.b16 %v957
  %v977 = vpack.c.b16 %v710, %v976
  %v978 = vrot.slane %v977, 1
  %v979 = vrot.slane %v715, 1
  %v980 = vsel %vm452, %v978, %v979
  %v981 = vrot.slane %v716, 1
  %v982 = vsel %vm452, %v979, %v981
  %v1002 = vunpack.c.l.b16 %v959
  %v1003 = vunpack.c.l.b16 %v960
  %v1004 = vunpack.c.l.b16 %v961
  %v1005 = vunpack.c.l.b16 %v962
  %v1006 = vunpack.c.l.b16 %v963
  %v1007 = vunpack.c.l.b16 %v964
  %v1008 = vunpack.c.l.b16 %v965
  %v1009 = vunpack.c.l.b16 %v966
  %v1010 = vunpack.c.l.b16 %v967
  %v1011 = vunpack.c.l.b16 %v968
  %v1012 = vunpack.c.l.b16 %v969
  %v1013 = vunpack.c.l.b16 %v970
  %v1014 = vunpack.c.l.b16 %v971
  %v1015 = vunpack.c.l.b16 %v972
  %v1016 = vunpack.c.l.b16 %v973
  %v1017 = vunpack.c.l.b16 %v974
  %v1018 = vpack.c.b16 %v1003, %v1002
  %v1019 = vpack.c.b16 %v1005, %v1004
  %v1020 = vpack.c.b16 %v1007, %v1006
  %v1021 = vpack.c.b16 %v1009, %v1008
  %v1022 = vpack.c.b16 %v1011, %v1010
  %v1023 = vpack.c.b16 %v1013, %v1012
  %v1024 = vpack.c.b16 %v1015, %v1014
  %v1025 = vpack.c.b16 %v1017, %v1016
  %1034 = vmatprep.subr.bf16.mxu0 0
  %1035 = vmatpush1.bf16.msra.mxu0 %v1018
  %1036 = vmatprep.subr.bf16.mxu0 0
  %1037 = vmatpush1.bf16.msra.mxu0 %v1019
  %1038 = vmatprep.subr.bf16.mxu0 0
  %1039 = vmatpush1.bf16.msra.mxu0 %v1020
  %1040 = vmatprep.subr.bf16.mxu0 0
  %1041 = vmatpush1.bf16.msra.mxu0 %v1021
  %1042 = vmatprep.subr.bf16.mxu0 0
  %1043 = vmatpush1.bf16.msra.mxu0 %v1022
  %1044 = vmatprep.subr.bf16.mxu0 0
  %1045 = vmatpush1.bf16.msra.mxu0 %v1023
  %1046 = vmatprep.subr.bf16.mxu0 0
  %1047 = vmatpush1.bf16.msra.mxu0 %v1024
  %1048 = vmatprep.subr.bf16.mxu0 0
  %1049 = vmatpush1.bf16.msra.mxu0 %v1025
  %1050 = vmatprep.subr.bf16.mxu0 0
  %1051 = vmatpush1.bf16.msra.mxu0 0
  %1052 = vmatprep.subr.bf16.mxu0 0
  %1053 = vmatpush1.bf16.msra.mxu0 0
  %1054 = vmatprep.subr.bf16.mxu0 0
  %1055 = vmatpush1.bf16.msra.mxu0 0
  %1056 = vmatprep.subr.bf16.mxu0 0
  %1057 = vmatpush1.bf16.msra.mxu0 0
  %1058 = vmatprep.subr.bf16.mxu0 0
  %1059 = vmatpush1.bf16.msra.mxu0 0
  %1060 = vmatprep.subr.bf16.mxu0 0
  %1061 = vmatpush1.bf16.msra.mxu0 0
  %1062 = vmatprep.subr.bf16.mxu0 0
  %1063 = vmatpush1.bf16.msra.mxu0 0
  %1064 = vmatprep.subr.bf16.mxu0 0
  %1065 = vmatpush1.bf16.msra.mxu0 0
  %1066 = vmatprep.mubr.bf16.mxu0 0
  %1067 = vmatmul.mubr.bf16.gmra.mrb[0].mxu0 %v980
  %v1068 = vpop.f32.mrb[0].mxu0
  %v1069 = vadd.f32 0.0, %v1068
  %v1070 = vpop.f32.mrb[0].mxu0
  %v1071 = vpop.f32.mrb[0].mxu0
  %v1072 = vadd.f32 0.0, %v1071
  %v1073 = vpop.f32.mrb[0].mxu0
  %1074 = vmatprep.mubr.bf16.mxu0 0
  %1075 = vmatmul.mubr.bf16.gmra.mrb[0].mxu0 %v982
  %v1076 = vpop.f32.mrb[0].mxu0
  %v1077 = vadd.f32 0.0, %v1076
  %v1078 = vpop.f32.mrb[0].mxu0
  %v1079 = vpop.f32.mrb[0].mxu0
  %v1080 = vadd.f32 0.0, %v1079
  %v1081 = vpop.f32.mrb[0].mxu0
  %1082 = vmatprep.mubr.bf16.mxu0 0
  %1083 = vmatmul.mubr.bf16.gmra.mrb[0].mxu0 %v981
  %v1084 = vpop.f32.mrb[0].mxu0
  %v1085 = vadd.f32 0.0, %v1084
  %v1086 = vpop.f32.mrb[0].mxu0
  %v1087 = vpop.f32.mrb[0].mxu0
  %v1088 = vpop.f32.mrb[0].mxu0
  %1089 = vdwg.mxu0
  %v1090 = vadd.f32 %v936, %v1069
  %v1091 = vadd.f32 %v939, %v1072
  %v1092 = vadd.f32 %v944, %v1077
  %v1093 = vadd.f32 %v947, %v1080
  %v1094 = vadd.f32 %v952, %v1085
  %v1095 = vld [vmem:[%s4] sm:$0x1]
  %v1097 = vlaneseq
  %v1098 = vshrl.u32 %v1097, 7
  %v1099 = vsub.s32 0, %v1098
  %v1100 = vrot.slane %v1095, %v1099
  %v1102 = vadd.f32 %v1090, %v1100
  %v1103 = vadd.f32 %v1091, %v1100
  %v1104 = vld [vmem:[%s0] sm:$0xff]
  %v1105 = vld [vmem:[%s0 + $0x8] sm:$0xff]
  %v1106 = vadd.f32 %v1102, %v1104
  %v1107 = vadd.f32 %v1103, %v1105
  %v1108 = vmax.f32 %v1106, 0.0
  %v1109 = vmax.f32 %v1107, 0.0
  %1110 = vst [vmem:[%s5] sm:$0xff] %v1108
  %1111 = vst [vmem:[%s5 + $0x8] sm:$0xff] %v1109
  %v1112 = vld [vmem:[%s4] sm:$0x1]
  %v1114 = vlaneseq
  %v1115 = vshrl.u32 %v1114, 7
  %v1116 = vsub.s32 0, %v1115
  %v1117 = vrot.slane %v1112, %v1116
  %v1119 = vadd.f32 %v1092, %v1117
  %v1120 = vadd.f32 %v1093, %v1117
  %v1121 = vadd.f32 %v1094, %v1117
  %v1122 = vld [vmem:[%s88] sm:$0xff]
  %v1123 = vld [vmem:[%s88 + $0x8] sm:$0xff]
  %vm1126 = vcmask 1041408
  %v1127 = vrot.slane %v1122, 6
  %v1128 = vrot.slane %v1123, 6
  %v1129 = vsel %vm1126, %v1127, %v1128
  %v1133 = vadd.f32 %v1119, %v1127
  %v1134 = vadd.f32 %v1120, %v1129
  %v1135 = vadd.f32 %v1121, %v1128
  %v1136 = vmax.f32 %v1133, 0.0
  %v1137 = vmax.f32 %v1134, 0.0
  %v1138 = vmax.f32 %v1135, 0.0
  %s1139 = scalar_lea.vmem %s5, 16
  %1140 = vst [vmem:[%s1139 - $0x2] sm:$0xfc] %v1136
  %1141 = vst [vmem:[%s1139 + $0x6] sm:$0xff] %v1137
  %1142 = vst [vmem:[%s1139 + $0xe] sm:$0x3] %v1138
  // Predicated region
  $region22: #{basic_block_forward.1} parent=0 // pred_check
    _
  $region23: #{basic_block_forward.1} parent=0 // pred_check_branch
    %1144 = sbr.rel (0) target = $region25
  $region24: #{basic_block_forward.1} parent=0 // pred_region
    _
  $region25: #{basic_block_forward.1} parent=0 // pred_fallthru
    _
  // Predicated region
  $region26: #{basic_block_forward.1} parent=0 // pred_check
    _
  $region27: #{basic_block_forward.1} parent=0 // pred_check_branch
    %1146 = sbr.rel (0) target = $region29
  $region28: #{basic_block_forward.1} parent=0 // pred_region
    _
  $region29: #{basic_block_forward.1} parent=0 // pred_fallthru
    _

</llo_original>
